<compile_context>
chip_gen: v6e
topology: v6e:2x2x1
jax: 0.10.0
libtpu: 0.0.40
codegen_flags: <defaults>
</compile_context>

<pallas_src>
import jax
import jax.numpy as jnp
from jax import lax
from jax.experimental import pallas as pl
from jax.experimental.pallas import tpu as pltpu

# 3x3 taps, row-major over (kh, kw) == the order used to flatten the weights.
_TAPS = tuple((dh, dw) for dh in (-1, 0, 1) for dw in (-1, 0, 1))


def _make_conv_kernel(H, W):
    """Builds the kernel with static image geometry closed over."""
    HW = H * W

    def kernel(x_ref, w_ref, b_ref, m_ref, o_ref, patch_ref):
        """Single grid step: fused dual-head 3x3 conv for the whole batch.

        x_ref     : (N, Cin, H*W)     input, image plane on the lane axis
        w_ref     : (2*Cout, 9*Cin)   fused [prediction ; residual] weights
        b_ref     : (2*Cout, 1)       fused biases
        m_ref     : (9, H*W)          0/1 boundary masks, one per tap
        o_ref     : (N, 2*Cout, H*W)  fused output (abs on residual half)
        patch_ref : (9*Cin, H*W)      VMEM scratch: im2col patch
        """
        n_batch, cin, _ = x_ref.shape
        c2 = o_ref.shape[1]
        cout = c2 // 2

        w_mat = w_ref[...]            # (C2, 9*Cin)
        bias = b_ref[...]             # (C2, 1) -> broadcast along lanes

        for n in range(n_batch):      # unrolled; N is small
            xn = x_ref[n]             # (Cin, HW), lane-dense
            # Build the im2col patch: one masked lane-rotated plane per tap.
            for t, (dh, dw) in enumerate(_TAPS):
                off = dh * W + dw                     # static python int
                if off == 0:
                    shifted = xn
                else:
                    s = off % HW                      # left-rotate by `off`
                    shifted = jnp.concatenate([xn[:, s:], xn[:, :s]], axis=1)
                if dh == 0 and dw == 0:
                    masked = shifted                  # center tap: always valid
                else:
                    masked = shifted * m_ref[pl.ds(t, 1), :]      # (Cin, HW)
                patch_ref[pl.ds(t * cin, cin), :] = masked

            # One MXU matmul per image: (C2, 9*Cin) @ (9*Cin, HW).
            acc = jnp.dot(w_mat, patch_ref[...],
                          preferred_element_type=jnp.float32) + bias

            # Prediction head unchanged; residual-magnitude head -> abs().
            # Disjoint static sub-range stores (no iota / select).
            o_ref[n, :cout, :] = acc[:cout, :].astype(o_ref.dtype)
            o_ref[n, cout:, :] = jnp.abs(acc[cout:, :]).astype(o_ref.dtype)

    return kernel


def residual_magnitude_l1_forward(x, w_pred, b_pred, w_res, b_res):
    """x: (N, Cin, H, W).  Conv params in PyTorch OIHW / (O,) layout.

    Returns (N, 2, Cout, H, W); head 0 = prediction, head 1 = |residual|.
    """
    N, Cin, H, W = x.shape
    Cout = w_pred.shape[0]
    C2 = 2 * Cout
    HW = H * W

    # ---- glue: only weights/masks get rearranged; x is just reshaped ----
    x_flat = x.reshape(N, Cin, HW)                       # free, row-major

    def flat_w(w):                                       # OIHW -> (O, kh,kw,I)
        return jnp.transpose(w, (0, 2, 3, 1)).reshape(Cout, 9 * Cin)
    w_fused = jnp.concatenate([flat_w(w_pred), flat_w(w_res)], axis=0)
    b_fused = jnp.concatenate([b_pred, b_res]).reshape(C2, 1)

    # 0/1 validity mask per tap ('same' zero padding handled in-kernel).
    hh = jnp.arange(H)
    ww = jnp.arange(W)
    masks = jnp.stack([
        (((hh + dh >= 0) & (hh + dh < H))[:, None]
         & ((ww + dw >= 0) & (ww + dw < W))[None, :]).reshape(HW)
        for dh, dw in _TAPS]).astype(x.dtype)            # (9, HW)

    # ---- hot path: one Pallas step for the whole batch ----
    out_flat = pl.pallas_call(
        _make_conv_kernel(H, W),
        out_shape=jax.ShapeDtypeStruct((N, C2, HW), x.dtype),
        grid=(1,),
        in_specs=[
            pl.BlockSpec((N, Cin, HW), lambda i: (0, 0, 0)),
            pl.BlockSpec((C2, 9 * Cin), lambda i: (0, 0)),
            pl.BlockSpec((C2, 1), lambda i: (0, 0)),
            pl.BlockSpec((9, HW), lambda i: (0, 0)),
        ],
        out_specs=pl.BlockSpec((N, C2, HW), lambda i: (0, 0, 0)),
        scratch_shapes=[pltpu.VMEM((9 * Cin, HW), jnp.float32)],
        compiler_params=pltpu.CompilerParams(
            dimension_semantics=("arbitrary",)),
    )(x_flat, w_fused, b_fused, masks)

    # (N, 2*Cout, H*W) -> (N, 2, Cout, H, W): pure reshape, no transpose.
    return out_flat.reshape(N, 2, Cout, H, W)


def _reference(x_nchw, w_pred, b_pred, w_res, b_res):
    """Pure-JAX reference (lax conv) for correctness checking."""
    def conv(x, w, b):
        y = lax.conv_general_dilated(
            x, w, window_strides=(1, 1), padding=((1, 1), (1, 1)),
            dimension_numbers=("NCHW", "OIHW", "NCHW"))
        return y + b[None, :, None, None]
    pred = conv(x_nchw, w_pred, b_pred)
    res = jnp.abs(conv(x_nchw, w_res, b_res))
    return jnp.concatenate([pred[:, None], res[:, None]], axis=1)


if __name__ == "__main__":
    # Small shapes consistent with the module: N=2, Cin=4, Cout=4, 16x16.
    N, Cin, Cout, H, W = 2, 4, 4, 16, 16

    key = jax.random.PRNGKey(0)
    kx, kwp, kbp, kwr, kbr = jax.random.split(key, 5)

    x = jax.random.normal(kx, (N, Cin, H, W), dtype=jnp.float32)
    w_pred = 0.1 * jax.random.normal(kwp, (Cout, Cin, 3, 3), dtype=jnp.float32)
    b_pred = 0.1 * jax.random.normal(kbp, (Cout,), dtype=jnp.float32)
    w_res = 0.1 * jax.random.normal(kwr, (Cout, Cin, 3, 3), dtype=jnp.float32)
    b_res = 0.1 * jax.random.normal(kbr, (Cout,), dtype=jnp.float32)

    fwd = jax.jit(residual_magnitude_l1_forward)
    out = jax.block_until_ready(fwd(x, w_pred, b_pred, w_res, b_res))

    ref = _reference(x, w_pred, b_pred, w_res, b_res)
    assert out.shape == (N, 2, Cout, H, W), out.shape
    assert jnp.allclose(out, ref, atol=1e-4, rtol=1e-4), \
        float(jnp.max(jnp.abs(out - ref)))

    print("KERNEL_OK")
</pallas_src>

<mosaic_0001>
module attributes {stable_mosaic.version = 11 : i64} {
  func.func @kernel(%arg0: i32, %arg1: memref<2x4x256xf32, #tpu.memory_space<vmem>>, %arg2: memref<8x36xf32, #tpu.memory_space<vmem>>, %arg3: memref<8x1xf32, #tpu.memory_space<vmem>>, %arg4: memref<9x256xf32, #tpu.memory_space<vmem>>, %arg5: memref<2x8x256xf32, #tpu.memory_space<vmem>>, %arg6: memref<36x256xf32, #tpu.memory_space<vmem>>) attributes {dimension_semantics = [#tpu.dimension_semantics<arbitrary>], iteration_bounds = array<i64: 1>, scalar_prefetch = 0 : i64, scratch_operands = 1 : i64, tpu.core_type = #tpu.core_type<tc>, window_params = [{pipeline_mode = #tpu.pipeline_mode<synchronous>, transform_indices = @transform_0, window_bounds = array<i64: 2, 4, 256>}, {pipeline_mode = #tpu.pipeline_mode<synchronous>, transform_indices = @transform_1, window_bounds = array<i64: 8, 36>}, {pipeline_mode = #tpu.pipeline_mode<synchronous>, transform_indices = @transform_2, window_bounds = array<i64: 8, 1>}, {pipeline_mode = #tpu.pipeline_mode<synchronous>, transform_indices = @transform_3, window_bounds = array<i64: 9, 256>}, {pipeline_mode = #tpu.pipeline_mode<synchronous>, transform_indices = @transform_4, window_bounds = array<i64: 2, 8, 256>}]} {
    %c0 = arith.constant 0 : index
    %c0_0 = arith.constant 0 : index
    %0 = vector.load %arg2[%c0, %c0_0] : memref<8x36xf32, #tpu.memory_space<vmem>>, vector<8x36xf32>
    %c0_1 = arith.constant 0 : index
    %c0_2 = arith.constant 0 : index
    %1 = vector.load %arg3[%c0_1, %c0_2] : memref<8x1xf32, #tpu.memory_space<vmem>>, vector<8x1xf32>
    %c0_3 = arith.constant 0 : index
    %c0_4 = arith.constant 0 : index
    %c0_5 = arith.constant 0 : index
    %2 = vector.load %arg1[%c0_3, %c0_4, %c0_5] : memref<2x4x256xf32, #tpu.memory_space<vmem>>, vector<1x4x256xf32>
    %3 = vector.shape_cast %2 : vector<1x4x256xf32> to vector<4x256xf32>
    %4 = vector.extract_strided_slice %3 {offsets = [0, 239], sizes = [4, 17], strides = [1, 1]} : vector<4x256xf32> to vector<4x17xf32>
    %5 = vector.extract_strided_slice %3 {offsets = [0, 0], sizes = [4, 239], strides = [1, 1]} : vector<4x256xf32> to vector<4x239xf32>
    %6 = tpu.concatenate %4, %5 in 1 : vector<4x17xf32>, vector<4x239xf32> -> vector<4x256xf32>
    %c0_6 = arith.constant 0 : index
    %c0_7 = arith.constant 0 : index
    %7 = vector.load %arg4[%c0_6, %c0_7] : memref<9x256xf32, #tpu.memory_space<vmem>>, vector<1x256xf32>
    %8 = vector.broadcast %7 : vector<1x256xf32> to vector<4x256xf32>
    %9 = arith.mulf %6, %8 : vector<4x256xf32>
    %c0_8 = arith.constant 0 : index
    %c0_9 = arith.constant 0 : index
    %10 = vector.load %arg6[%c0_8, %c0_9] : memref<36x256xf32, #tpu.memory_space<vmem>>, vector<4x256xf32>
    tpu.vector_store %arg6[%c0_8, %c0_9], %9 {strides = array<i32>} : memref<36x256xf32, #tpu.memory_space<vmem>>, vector<4x256xf32>,
    %11 = vector.extract_strided_slice %3 {offsets = [0, 240], sizes = [4, 16], strides = [1, 1]} : vector<4x256xf32> to vector<4x16xf32>
    %12 = vector.extract_strided_slice %3 {offsets = [0, 0], sizes = [4, 240], strides = [1, 1]} : vector<4x256xf32> to vector<4x240xf32>
    %13 = tpu.concatenate %11, %12 in 1 : vector<4x16xf32>, vector<4x240xf32> -> vector<4x256xf32>
    %c1 = arith.constant 1 : index
    %c0_10 = arith.constant 0 : index
    %14 = vector.load %arg4[%c1, %c0_10] : memref<9x256xf32, #tpu.memory_space<vmem>>, vector<1x256xf32>
    %15 = vector.broadcast %14 : vector<1x256xf32> to vector<4x256xf32>
    %16 = arith.mulf %13, %15 : vector<4x256xf32>
    %c4 = arith.constant 4 : index
    %c0_11 = arith.constant 0 : index
    %17 = vector.load %arg6[%c4, %c0_11] : memref<36x256xf32, #tpu.memory_space<vmem>>, vector<4x256xf32>
    tpu.vector_store %arg6[%c4, %c0_11], %16 {strides = array<i32>} : memref<36x256xf32, #tpu.memory_space<vmem>>, vector<4x256xf32>,
    %18 = vector.extract_strided_slice %3 {offsets = [0, 241], sizes = [4, 15], strides = [1, 1]} : vector<4x256xf32> to vector<4x15xf32>
    %19 = vector.extract_strided_slice %3 {offsets = [0, 0], sizes = [4, 241], strides = [1, 1]} : vector<4x256xf32> to vector<4x241xf32>
    %20 = tpu.concatenate %18, %19 in 1 : vector<4x15xf32>, vector<4x241xf32> -> vector<4x256xf32>
    %c2 = arith.constant 2 : index
    %c0_12 = arith.constant 0 : index
    %21 = vector.load %arg4[%c2, %c0_12] : memref<9x256xf32, #tpu.memory_space<vmem>>, vector<1x256xf32>
    %22 = vector.broadcast %21 : vector<1x256xf32> to vector<4x256xf32>
    %23 = arith.mulf %20, %22 : vector<4x256xf32>
    %c8 = arith.constant 8 : index
    %c0_13 = arith.constant 0 : index
    %24 = vector.load %arg6[%c8, %c0_13] : memref<36x256xf32, #tpu.memory_space<vmem>>, vector<4x256xf32>
    tpu.vector_store %arg6[%c8, %c0_13], %23 {strides = array<i32>} : memref<36x256xf32, #tpu.memory_space<vmem>>, vector<4x256xf32>,
    %25 = vector.extract_strided_slice %3 {offsets = [0, 255], sizes = [4, 1], strides = [1, 1]} : vector<4x256xf32> to vector<4x1xf32>
    %26 = vector.extract_strided_slice %3 {offsets = [0, 0], sizes = [4, 255], strides = [1, 1]} : vector<4x256xf32> to vector<4x255xf32>
    %27 = tpu.concatenate %25, %26 in 1 : vector<4x1xf32>, vector<4x255xf32> -> vector<4x256xf32>
    %c3 = arith.constant 3 : index
    %c0_14 = arith.constant 0 : index
    %28 = vector.load %arg4[%c3, %c0_14] : memref<9x256xf32, #tpu.memory_space<vmem>>, vector<1x256xf32>
    %29 = vector.broadcast %28 : vector<1x256xf32> to vector<4x256xf32>
    %30 = arith.mulf %27, %29 : vector<4x256xf32>
    %c12 = arith.constant 12 : index
    %c0_15 = arith.constant 0 : index
    %31 = vector.load %arg6[%c12, %c0_15] : memref<36x256xf32, #tpu.memory_space<vmem>>, vector<4x256xf32>
    tpu.vector_store %arg6[%c12, %c0_15], %30 {strides = array<i32>} : memref<36x256xf32, #tpu.memory_space<vmem>>, vector<4x256xf32>,
    %c16 = arith.constant 16 : index
    %c0_16 = arith.constant 0 : index
    %32 = vector.load %arg6[%c16, %c0_16] : memref<36x256xf32, #tpu.memory_space<vmem>>, vector<4x256xf32>
    tpu.vector_store %arg6[%c16, %c0_16], %3 {strides = array<i32>} : memref<36x256xf32, #tpu.memory_space<vmem>>, vector<4x256xf32>,
    %33 = vector.extract_strided_slice %3 {offsets = [0, 1], sizes = [4, 255], strides = [1, 1]} : vector<4x256xf32> to vector<4x255xf32>
    %34 = vector.extract_strided_slice %3 {offsets = [0, 0], sizes = [4, 1], strides = [1, 1]} : vector<4x256xf32> to vector<4x1xf32>
    %35 = tpu.concatenate %33, %34 in 1 : vector<4x255xf32>, vector<4x1xf32> -> vector<4x256xf32>
    %c5 = arith.constant 5 : index
    %c0_17 = arith.constant 0 : index
    %36 = vector.load %arg4[%c5, %c0_17] : memref<9x256xf32, #tpu.memory_space<vmem>>, vector<1x256xf32>
    %37 = vector.broadcast %36 : vector<1x256xf32> to vector<4x256xf32>
    %38 = arith.mulf %35, %37 : vector<4x256xf32>
    %c20 = arith.constant 20 : index
    %c0_18 = arith.constant 0 : index
    %39 = vector.load %arg6[%c20, %c0_18] : memref<36x256xf32, #tpu.memory_space<vmem>>, vector<4x256xf32>
    tpu.vector_store %arg6[%c20, %c0_18], %38 {strides = array<i32>} : memref<36x256xf32, #tpu.memory_space<vmem>>, vector<4x256xf32>,
    %40 = vector.extract_strided_slice %3 {offsets = [0, 15], sizes = [4, 241], strides = [1, 1]} : vector<4x256xf32> to vector<4x241xf32>
    %41 = vector.extract_strided_slice %3 {offsets = [0, 0], sizes = [4, 15], strides = [1, 1]} : vector<4x256xf32> to vector<4x15xf32>
    %42 = tpu.concatenate %40, %41 in 1 : vector<4x241xf32>, vector<4x15xf32> -> vector<4x256xf32>
    %c6 = arith.constant 6 : index
    %c0_19 = arith.constant 0 : index
    %43 = vector.load %arg4[%c6, %c0_19] : memref<9x256xf32, #tpu.memory_space<vmem>>, vector<1x256xf32>
    %44 = vector.broadcast %43 : vector<1x256xf32> to vector<4x256xf32>
    %45 = arith.mulf %42, %44 : vector<4x256xf32>
    %c24 = arith.constant 24 : index
    %c0_20 = arith.constant 0 : index
    %46 = vector.load %arg6[%c24, %c0_20] : memref<36x256xf32, #tpu.memory_space<vmem>>, vector<4x256xf32>
    tpu.vector_store %arg6[%c24, %c0_20], %45 {strides = array<i32>} : memref<36x256xf32, #tpu.memory_space<vmem>>, vector<4x256xf32>,
    %47 = vector.extract_strided_slice %3 {offsets = [0, 16], sizes = [4, 240], strides = [1, 1]} : vector<4x256xf32> to vector<4x240xf32>
    %48 = vector.extract_strided_slice %3 {offsets = [0, 0], sizes = [4, 16], strides = [1, 1]} : vector<4x256xf32> to vector<4x16xf32>
    %49 = tpu.concatenate %47, %48 in 1 : vector<4x240xf32>, vector<4x16xf32> -> vector<4x256xf32>
    %c7 = arith.constant 7 : index
    %c0_21 = arith.constant 0 : index
    %50 = vector.load %arg4[%c7, %c0_21] : memref<9x256xf32, #tpu.memory_space<vmem>>, vector<1x256xf32>
    %51 = vector.broadcast %50 : vector<1x256xf32> to vector<4x256xf32>
    %52 = arith.mulf %49, %51 : vector<4x256xf32>
    %c28 = arith.constant 28 : index
    %c0_22 = arith.constant 0 : index
    %53 = vector.load %arg6[%c28, %c0_22] : memref<36x256xf32, #tpu.memory_space<vmem>>, vector<4x256xf32>
    tpu.vector_store %arg6[%c28, %c0_22], %52 {strides = array<i32>} : memref<36x256xf32, #tpu.memory_space<vmem>>, vector<4x256xf32>,
    %54 = vector.extract_strided_slice %3 {offsets = [0, 17], sizes = [4, 239], strides = [1, 1]} : vector<4x256xf32> to vector<4x239xf32>
    %55 = vector.extract_strided_slice %3 {offsets = [0, 0], sizes = [4, 17], strides = [1, 1]} : vector<4x256xf32> to vector<4x17xf32>
    %56 = tpu.concatenate %54, %55 in 1 : vector<4x239xf32>, vector<4x17xf32> -> vector<4x256xf32>
    %c8_23 = arith.constant 8 : index
    %c0_24 = arith.constant 0 : index
    %57 = vector.load %arg4[%c8_23, %c0_24] : memref<9x256xf32, #tpu.memory_space<vmem>>, vector<1x256xf32>
    %58 = vector.broadcast %57 : vector<1x256xf32> to vector<4x256xf32>
    %59 = arith.mulf %56, %58 : vector<4x256xf32>
    %c32 = arith.constant 32 : index
    %c0_25 = arith.constant 0 : index
    %60 = vector.load %arg6[%c32, %c0_25] : memref<36x256xf32, #tpu.memory_space<vmem>>, vector<4x256xf32>
    tpu.vector_store %arg6[%c32, %c0_25], %59 {strides = array<i32>} : memref<36x256xf32, #tpu.memory_space<vmem>>, vector<4x256xf32>,
    %c0_26 = arith.constant 0 : index
    %c0_27 = arith.constant 0 : index
    %61 = vector.load %arg6[%c0_26, %c0_27] : memref<36x256xf32, #tpu.memory_space<vmem>>, vector<36x256xf32>
    %cst = arith.constant dense<0.000000e+00> : vector<8x256xf32>
    %62 = tpu.matmul %0, %61, %cst {dimension_numbers = #tpu.dot_dimension_numbers<[1], [0], [0], [1], [0, 0, 1, 1], [], []>} : vector<8x36xf32>, vector<36x256xf32>, vector<8x256xf32> -> vector<8x256xf32>
    %63 = vector.broadcast %1 : vector<8x1xf32> to vector<8x256xf32>
    %64 = arith.addf %62, %63 : vector<8x256xf32>
    %65 = vector.extract_strided_slice %64 {offsets = [0, 0], sizes = [4, 256], strides = [1, 1]} : vector<8x256xf32> to vector<4x256xf32>
    %c0_28 = arith.constant 0 : index
    %c0_29 = arith.constant 0 : index
    %c0_30 = arith.constant 0 : index
    %66 = vector.load %arg5[%c0_28, %c0_29, %c0_30] : memref<2x8x256xf32, #tpu.memory_space<vmem>>, vector<1x4x256xf32>
    %67 = vector.shape_cast %66 : vector<1x4x256xf32> to vector<4x256xf32>
    %68 = vector.shape_cast %65 : vector<4x256xf32> to vector<1x4x256xf32>
    tpu.vector_store %arg5[%c0_28, %c0_29, %c0_30], %68 {strides = array<i32>} : memref<2x8x256xf32, #tpu.memory_space<vmem>>, vector<1x4x256xf32>,
    %69 = vector.extract_strided_slice %64 {offsets = [4, 0], sizes = [4, 256], strides = [1, 1]} : vector<8x256xf32> to vector<4x256xf32>
    %70 = math.absf %69 : vector<4x256xf32>
    %c0_31 = arith.constant 0 : index
    %c4_32 = arith.constant 4 : index
    %c0_33 = arith.constant 0 : index
    %71 = vector.load %arg5[%c0_31, %c4_32, %c0_33] : memref<2x8x256xf32, #tpu.memory_space<vmem>>, vector<1x4x256xf32>
    %72 = vector.shape_cast %71 : vector<1x4x256xf32> to vector<4x256xf32>
    %73 = vector.shape_cast %70 : vector<4x256xf32> to vector<1x4x256xf32>
    tpu.vector_store %arg5[%c0_31, %c4_32, %c0_33], %73 {strides = array<i32>} : memref<2x8x256xf32, #tpu.memory_space<vmem>>, vector<1x4x256xf32>,
    %c1_34 = arith.constant 1 : index
    %c0_35 = arith.constant 0 : index
    %c0_36 = arith.constant 0 : index
    %74 = vector.load %arg1[%c1_34, %c0_35, %c0_36] : memref<2x4x256xf32, #tpu.memory_space<vmem>>, vector<1x4x256xf32>
    %75 = vector.shape_cast %74 : vector<1x4x256xf32> to vector<4x256xf32>
    %76 = vector.extract_strided_slice %75 {offsets = [0, 239], sizes = [4, 17], strides = [1, 1]} : vector<4x256xf32> to vector<4x17xf32>
    %77 = vector.extract_strided_slice %75 {offsets = [0, 0], sizes = [4, 239], strides = [1, 1]} : vector<4x256xf32> to vector<4x239xf32>
    %78 = tpu.concatenate %76, %77 in 1 : vector<4x17xf32>, vector<4x239xf32> -> vector<4x256xf32>
    %c0_37 = arith.constant 0 : index
    %c0_38 = arith.constant 0 : index
    %79 = vector.load %arg4[%c0_37, %c0_38] : memref<9x256xf32, #tpu.memory_space<vmem>>, vector<1x256xf32>
    %80 = vector.broadcast %79 : vector<1x256xf32> to vector<4x256xf32>
    %81 = arith.mulf %78, %80 : vector<4x256xf32>
    %c0_39 = arith.constant 0 : index
    %c0_40 = arith.constant 0 : index
    %82 = vector.load %arg6[%c0_39, %c0_40] : memref<36x256xf32, #tpu.memory_space<vmem>>, vector<4x256xf32>
    tpu.vector_store %arg6[%c0_39, %c0_40], %81 {strides = array<i32>} : memref<36x256xf32, #tpu.memory_space<vmem>>, vector<4x256xf32>,
    %83 = vector.extract_strided_slice %75 {offsets = [0, 240], sizes = [4, 16], strides = [1, 1]} : vector<4x256xf32> to vector<4x16xf32>
    %84 = vector.extract_strided_slice %75 {offsets = [0, 0], sizes = [4, 240], strides = [1, 1]} : vector<4x256xf32> to vector<4x240xf32>
    %85 = tpu.concatenate %83, %84 in 1 : vector<4x16xf32>, vector<4x240xf32> -> vector<4x256xf32>
    %c1_41 = arith.constant 1 : index
    %c0_42 = arith.constant 0 : index
    %86 = vector.load %arg4[%c1_41, %c0_42] : memref<9x256xf32, #tpu.memory_space<vmem>>, vector<1x256xf32>
    %87 = vector.broadcast %86 : vector<1x256xf32> to vector<4x256xf32>
    %88 = arith.mulf %85, %87 : vector<4x256xf32>
    %c4_43 = arith.constant 4 : index
    %c0_44 = arith.constant 0 : index
    %89 = vector.load %arg6[%c4_43, %c0_44] : memref<36x256xf32, #tpu.memory_space<vmem>>, vector<4x256xf32>
    tpu.vector_store %arg6[%c4_43, %c0_44], %88 {strides = array<i32>} : memref<36x256xf32, #tpu.memory_space<vmem>>, vector<4x256xf32>,
    %90 = vector.extract_strided_slice %75 {offsets = [0, 241], sizes = [4, 15], strides = [1, 1]} : vector<4x256xf32> to vector<4x15xf32>
    %91 = vector.extract_strided_slice %75 {offsets = [0, 0], sizes = [4, 241], strides = [1, 1]} : vector<4x256xf32> to vector<4x241xf32>
    %92 = tpu.concatenate %90, %91 in 1 : vector<4x15xf32>, vector<4x241xf32> -> vector<4x256xf32>
    %c2_45 = arith.constant 2 : index
    %c0_46 = arith.constant 0 : index
    %93 = vector.load %arg4[%c2_45, %c0_46] : memref<9x256xf32, #tpu.memory_space<vmem>>, vector<1x256xf32>
    %94 = vector.broadcast %93 : vector<1x256xf32> to vector<4x256xf32>
    %95 = arith.mulf %92, %94 : vector<4x256xf32>
    %c8_47 = arith.constant 8 : index
    %c0_48 = arith.constant 0 : index
    %96 = vector.load %arg6[%c8_47, %c0_48] : memref<36x256xf32, #tpu.memory_space<vmem>>, vector<4x256xf32>
    tpu.vector_store %arg6[%c8_47, %c0_48], %95 {strides = array<i32>} : memref<36x256xf32, #tpu.memory_space<vmem>>, vector<4x256xf32>,
    %97 = vector.extract_strided_slice %75 {offsets = [0, 255], sizes = [4, 1], strides = [1, 1]} : vector<4x256xf32> to vector<4x1xf32>
    %98 = vector.extract_strided_slice %75 {offsets = [0, 0], sizes = [4, 255], strides = [1, 1]} : vector<4x256xf32> to vector<4x255xf32>
    %99 = tpu.concatenate %97, %98 in 1 : vector<4x1xf32>, vector<4x255xf32> -> vector<4x256xf32>
    %c3_49 = arith.constant 3 : index
    %c0_50 = arith.constant 0 : index
    %100 = vector.load %arg4[%c3_49, %c0_50] : memref<9x256xf32, #tpu.memory_space<vmem>>, vector<1x256xf32>
    %101 = vector.broadcast %100 : vector<1x256xf32> to vector<4x256xf32>
    %102 = arith.mulf %99, %101 : vector<4x256xf32>
    %c12_51 = arith.constant 12 : index
    %c0_52 = arith.constant 0 : index
    %103 = vector.load %arg6[%c12_51, %c0_52] : memref<36x256xf32, #tpu.memory_space<vmem>>, vector<4x256xf32>
    tpu.vector_store %arg6[%c12_51, %c0_52], %102 {strides = array<i32>} : memref<36x256xf32, #tpu.memory_space<vmem>>, vector<4x256xf32>,
    %c16_53 = arith.constant 16 : index
    %c0_54 = arith.constant 0 : index
    %104 = vector.load %arg6[%c16_53, %c0_54] : memref<36x256xf32, #tpu.memory_space<vmem>>, vector<4x256xf32>
    tpu.vector_store %arg6[%c16_53, %c0_54], %75 {strides = array<i32>} : memref<36x256xf32, #tpu.memory_space<vmem>>, vector<4x256xf32>,
    %105 = vector.extract_strided_slice %75 {offsets = [0, 1], sizes = [4, 255], strides = [1, 1]} : vector<4x256xf32> to vector<4x255xf32>
    %106 = vector.extract_strided_slice %75 {offsets = [0, 0], sizes = [4, 1], strides = [1, 1]} : vector<4x256xf32> to vector<4x1xf32>
    %107 = tpu.concatenate %105, %106 in 1 : vector<4x255xf32>, vector<4x1xf32> -> vector<4x256xf32>
    %c5_55 = arith.constant 5 : index
    %c0_56 = arith.constant 0 : index
    %108 = vector.load %arg4[%c5_55, %c0_56] : memref<9x256xf32, #tpu.memory_space<vmem>>, vector<1x256xf32>
    %109 = vector.broadcast %108 : vector<1x256xf32> to vector<4x256xf32>
    %110 = arith.mulf %107, %109 : vector<4x256xf32>
    %c20_57 = arith.constant 20 : index
    %c0_58 = arith.constant 0 : index
    %111 = vector.load %arg6[%c20_57, %c0_58] : memref<36x256xf32, #tpu.memory_space<vmem>>, vector<4x256xf32>
    tpu.vector_store %arg6[%c20_57, %c0_58], %110 {strides = array<i32>} : memref<36x256xf32, #tpu.memory_space<vmem>>, vector<4x256xf32>,
    %112 = vector.extract_strided_slice %75 {offsets = [0, 15], sizes = [4, 241], strides = [1, 1]} : vector<4x256xf32> to vector<4x241xf32>
    %113 = vector.extract_strided_slice %75 {offsets = [0, 0], sizes = [4, 15], strides = [1, 1]} : vector<4x256xf32> to vector<4x15xf32>
    %114 = tpu.concatenate %112, %113 in 1 : vector<4x241xf32>, vector<4x15xf32> -> vector<4x256xf32>
    %c6_59 = arith.constant 6 : index
    %c0_60 = arith.constant 0 : index
    %115 = vector.load %arg4[%c6_59, %c0_60] : memref<9x256xf32, #tpu.memory_space<vmem>>, vector<1x256xf32>
    %116 = vector.broadcast %115 : vector<1x256xf32> to vector<4x256xf32>
    %117 = arith.mulf %114, %116 : vector<4x256xf32>
    %c24_61 = arith.constant 24 : index
    %c0_62 = arith.constant 0 : index
    %118 = vector.load %arg6[%c24_61, %c0_62] : memref<36x256xf32, #tpu.memory_space<vmem>>, vector<4x256xf32>
    tpu.vector_store %arg6[%c24_61, %c0_62], %117 {strides = array<i32>} : memref<36x256xf32, #tpu.memory_space<vmem>>, vector<4x256xf32>,
    %119 = vector.extract_strided_slice %75 {offsets = [0, 16], sizes = [4, 240], strides = [1, 1]} : vector<4x256xf32> to vector<4x240xf32>
    %120 = vector.extract_strided_slice %75 {offsets = [0, 0], sizes = [4, 16], strides = [1, 1]} : vector<4x256xf32> to vector<4x16xf32>
    %121 = tpu.concatenate %119, %120 in 1 : vector<4x240xf32>, vector<4x16xf32> -> vector<4x256xf32>
    %c7_63 = arith.constant 7 : index
    %c0_64 = arith.constant 0 : index
    %122 = vector.load %arg4[%c7_63, %c0_64] : memref<9x256xf32, #tpu.memory_space<vmem>>, vector<1x256xf32>
    %123 = vector.broadcast %122 : vector<1x256xf32> to vector<4x256xf32>
    %124 = arith.mulf %121, %123 : vector<4x256xf32>
    %c28_65 = arith.constant 28 : index
    %c0_66 = arith.constant 0 : index
    %125 = vector.load %arg6[%c28_65, %c0_66] : memref<36x256xf32, #tpu.memory_space<vmem>>, vector<4x256xf32>
    tpu.vector_store %arg6[%c28_65, %c0_66], %124 {strides = array<i32>} : memref<36x256xf32, #tpu.memory_space<vmem>>, vector<4x256xf32>,
    %126 = vector.extract_strided_slice %75 {offsets = [0, 17], sizes = [4, 239], strides = [1, 1]} : vector<4x256xf32> to vector<4x239xf32>
    %127 = vector.extract_strided_slice %75 {offsets = [0, 0], sizes = [4, 17], strides = [1, 1]} : vector<4x256xf32> to vector<4x17xf32>
    %128 = tpu.concatenate %126, %127 in 1 : vector<4x239xf32>, vector<4x17xf32> -> vector<4x256xf32>
    %c8_67 = arith.constant 8 : index
    %c0_68 = arith.constant 0 : index
    %129 = vector.load %arg4[%c8_67, %c0_68] : memref<9x256xf32, #tpu.memory_space<vmem>>, vector<1x256xf32>
    %130 = vector.broadcast %129 : vector<1x256xf32> to vector<4x256xf32>
    %131 = arith.mulf %128, %130 : vector<4x256xf32>
    %c32_69 = arith.constant 32 : index
    %c0_70 = arith.constant 0 : index
    %132 = vector.load %arg6[%c32_69, %c0_70] : memref<36x256xf32, #tpu.memory_space<vmem>>, vector<4x256xf32>
    tpu.vector_store %arg6[%c32_69, %c0_70], %131 {strides = array<i32>} : memref<36x256xf32, #tpu.memory_space<vmem>>, vector<4x256xf32>,
    %c0_71 = arith.constant 0 : index
    %c0_72 = arith.constant 0 : index
    %133 = vector.load %arg6[%c0_71, %c0_72] : memref<36x256xf32, #tpu.memory_space<vmem>>, vector<36x256xf32>
    %cst_73 = arith.constant dense<0.000000e+00> : vector<8x256xf32>
    %134 = tpu.matmul %0, %133, %cst_73 {dimension_numbers = #tpu.dot_dimension_numbers<[1], [0], [0], [1], [0, 0, 1, 1], [], []>} : vector<8x36xf32>, vector<36x256xf32>, vector<8x256xf32> -> vector<8x256xf32>
    %135 = vector.broadcast %1 : vector<8x1xf32> to vector<8x256xf32>
    %136 = arith.addf %134, %135 : vector<8x256xf32>
    %137 = vector.extract_strided_slice %136 {offsets = [0, 0], sizes = [4, 256], strides = [1, 1]} : vector<8x256xf32> to vector<4x256xf32>
    %c1_74 = arith.constant 1 : index
    %c0_75 = arith.constant 0 : index
    %c0_76 = arith.constant 0 : index
    %138 = vector.load %arg5[%c1_74, %c0_75, %c0_76] : memref<2x8x256xf32, #tpu.memory_space<vmem>>, vector<1x4x256xf32>
    %139 = vector.shape_cast %138 : vector<1x4x256xf32> to vector<4x256xf32>
    %140 = vector.shape_cast %137 : vector<4x256xf32> to vector<1x4x256xf32>
    tpu.vector_store %arg5[%c1_74, %c0_75, %c0_76], %140 {strides = array<i32>} : memref<2x8x256xf32, #tpu.memory_space<vmem>>, vector<1x4x256xf32>,
    %141 = vector.extract_strided_slice %136 {offsets = [4, 0], sizes = [4, 256], strides = [1, 1]} : vector<8x256xf32> to vector<4x256xf32>
    %142 = math.absf %141 : vector<4x256xf32>
    %c1_77 = arith.constant 1 : index
    %c4_78 = arith.constant 4 : index
    %c0_79 = arith.constant 0 : index
    %143 = vector.load %arg5[%c1_77, %c4_78, %c0_79] : memref<2x8x256xf32, #tpu.memory_space<vmem>>, vector<1x4x256xf32>
    %144 = vector.shape_cast %143 : vector<1x4x256xf32> to vector<4x256xf32>
    %145 = vector.shape_cast %142 : vector<4x256xf32> to vector<1x4x256xf32>
    tpu.vector_store %arg5[%c1_77, %c4_78, %c0_79], %145 {strides = array<i32>} : memref<2x8x256xf32, #tpu.memory_space<vmem>>, vector<1x4x256xf32>,
    return
  }
  func.func @transform_0(%arg0: i32) -> (i32, i32, i32) {
    %c0_i32 = arith.constant 0 : i32
    %c0_i32_0 = arith.constant 0 : i32
    %c0_i32_1 = arith.constant 0 : i32
    %c0_i32_2 = arith.constant 0 : i32
    return %c0_i32, %c0_i32_0, %c0_i32_1 : i32, i32, i32
  }
  func.func @transform_1(%arg0: i32) -> (i32, i32) {
    %c0_i32 = arith.constant 0 : i32
    %c0_i32_0 = arith.constant 0 : i32
    %c0_i32_1 = arith.constant 0 : i32
    return %c0_i32, %c0_i32_0 : i32, i32
  }
  func.func @transform_2(%arg0: i32) -> (i32, i32) {
    %c0_i32 = arith.constant 0 : i32
    %c0_i32_0 = arith.constant 0 : i32
    %c0_i32_1 = arith.constant 0 : i32
    return %c0_i32, %c0_i32_0 : i32, i32
  }
  func.func @transform_3(%arg0: i32) -> (i32, i32) {
    %c0_i32 = arith.constant 0 : i32
    %c0_i32_0 = arith.constant 0 : i32
    %c0_i32_1 = arith.constant 0 : i32
    return %c0_i32, %c0_i32_0 : i32, i32
  }
  func.func @transform_4(%arg0: i32) -> (i32, i32, i32) {
    %c0_i32 = arith.constant 0 : i32
    %c0_i32_0 = arith.constant 0 : i32
    %c0_i32_1 = arith.constant 0 : i32
    %c0_i32_2 = arith.constant 0 : i32
    return %c0_i32, %c0_i32_0, %c0_i32_1 : i32, i32, i32
  }
}

</mosaic_0001>

<llo_original>
// kernel: residual_magnitude_l1_forward.1
$region0: #{residual_magnitude_l1_forward.1}
  #allocation0 [shape = 'u32[]', space=smem, size = 0x4, offset = 0x4, fixed_abs, tag = 'smem constant byte address 0x4 - core index']
  #allocation1 [shape = 'u32[144,128]{1,0:T(1,128)}', space=vmem, size = 0x12000, scoped, tag = 'internal scratch']
  #allocation2 [shape = 'f32[36,256]{1,0:T(8,128)}', space=vmem, size = 0xa000, scoped, tag = 'scratch operand']
  %s0 = inlined_call_operand.vmem [shape: f32[2,4,256], index: 0, kind: input, shape index: {}]
  %s1 = inlined_call_operand.vmem [shape: f32[8,36], index: 1, kind: input, shape index: {}]
  %s2 = inlined_call_operand.vmem [shape: f32[8,1], index: 2, kind: input, shape index: {}]
  %s3 = inlined_call_operand.vmem [shape: f32[9,256], index: 3, kind: input, shape index: {}]
  %s4 = inlined_call_operand.vmem [shape: f32[2,8,256], index: 4, kind: output, shape index: {}]
  %s5 = sld [smem:[#allocation0]]
  $region26: #{residual_magnitude_l1_forward.1} parent=0
    _
  %s7 = ssub.s32 1, %s5
  %s8 = scalar_select 0, %s7, %s5
  // Predicated region
  $region2: #{residual_magnitude_l1_forward.1} parent=0 // pred_check
    _
  $region3: #{residual_magnitude_l1_forward.1} parent=0 // pred_check_branch
    %10 = sbr.rel (0) target = $region5
  $region4: #{residual_magnitude_l1_forward.1} parent=0 // pred_region
    _
  $region5: #{residual_magnitude_l1_forward.1} parent=0 // pred_fallthru
    _
  // Predicated region
  $region6: #{residual_magnitude_l1_forward.1} parent=0 // pred_check
    _
  $region7: #{residual_magnitude_l1_forward.1} parent=0 // pred_check_branch
    %12 = sbr.rel (0) target = $region9
  $region8: #{residual_magnitude_l1_forward.1} parent=0 // pred_region
    _
  $region9: #{residual_magnitude_l1_forward.1} parent=0 // pred_fallthru
    _
  // Predicated region
  $region10: #{residual_magnitude_l1_forward.1} parent=0 // pred_check
    _
  $region11: #{residual_magnitude_l1_forward.1} parent=0 // pred_check_branch
    %14 = sbr.rel (0) target = $region13
  $region12: #{residual_magnitude_l1_forward.1} parent=0 // pred_region
    _
  $region13: #{residual_magnitude_l1_forward.1} parent=0 // pred_fallthru
    _
  // Predicated region
  $region14: #{residual_magnitude_l1_forward.1} parent=0 // pred_check
    _
  $region15: #{residual_magnitude_l1_forward.1} parent=0 // pred_check_branch
    %16 = sbr.rel (0) target = $region17
  $region16: #{residual_magnitude_l1_forward.1} parent=0 // pred_region
    _
  $region17: #{residual_magnitude_l1_forward.1} parent=0 // pred_fallthru
    _
  %v17 = vld [vmem:[%s1] sm:$0xff]
  %v18 = vld [vmem:[%s2] sm:$0xff]
  %v19 = vld [vmem:[%s0] sm:$0xff]
  %v21 = vcombine.high %v19, %v19
  %22 = vrot.lane.b32.xlu0 %v21, 17
  %v23 = vpop.permute.xlu0 %22
  %25 = vrot.lane.b32.xlu0 %v19, 17
  %v26 = vpop.permute.xlu0 %25
  %vm27 = vcmask 138240
  %v28 = vsel %vm27, %v26, %v23
  %v31 = vsel %vm27, %v23, %v26
  %v32 = vld [vmem:[%s3] ss:$8 sm:$0x3]
  %v34 = vlaneseq
  %v35 = vshrl.u32 %v34, 7
  %v36 = vsub.s32 0, %v35
  %v37 = vrot.slane %v32, %v36
  %v38 = vlaneseq
  %v39 = vshrl.u32 %v38, 7
  %v40 = vsub.s32 1, %v39
  %v41 = vrot.slane %v32, %v40
  %v44 = vmul.f32 %v31, %v37
  %v45 = vmul.f32 %v28, %v41
  %46 = vst [vmem:[#allocation2] sm:$0xf] %v44
  %47 = vst [vmem:[#allocation2 + $0x8] sm:$0xf] %v45
  %48 = vrot.lane.b32.xlu0 %v21, 16
  %v49 = vpop.permute.xlu0 %48
  %51 = vrot.lane.b32.xlu0 %v19, 16
  %v52 = vpop.permute.xlu0 %51
  %vm53 = vcmask 130048
  %v54 = vsel %vm53, %v52, %v49
  %v57 = vsel %vm53, %v49, %v52
  %s58 = scalar_lea.vmem %s3, 1
  %v59 = vld [vmem:[%s58] ss:$8 sm:$0x3]
  %v61 = vlaneseq
  %v62 = vshrl.u32 %v61, 7
  %v63 = vsub.s32 0, %v62
  %v64 = vrot.slane %v59, %v63
  %v65 = vlaneseq
  %v66 = vshrl.u32 %v65, 7
  %v67 = vsub.s32 1, %v66
  %v68 = vrot.slane %v59, %v67
  %v71 = vmul.f32 %v57, %v64
  %v72 = vmul.f32 %v54, %v68
  %v75 = vrot.slane %v71, 4
  %v76 = vrot.slane %v72, 4
  %79 = vst [vmem:[#allocation2] sm:$0xf0] %v75
  %80 = vst [vmem:[#allocation2 + $0x8] sm:$0xf0] %v76
  %81 = vrot.lane.b32.xlu0 %v21, 15
  %v82 = vpop.permute.xlu0 %81
  %84 = vrot.lane.b32.xlu0 %v19, 15
  %v85 = vpop.permute.xlu0 %84
  %vm86 = vcmask 121856
  %v87 = vsel %vm86, %v85, %v82
  %v90 = vsel %vm86, %v82, %v85
  %s91 = scalar_lea.vmem %s3, 2
  %v92 = vld [vmem:[%s91] ss:$8 sm:$0x3]
  %v94 = vlaneseq
  %v95 = vshrl.u32 %v94, 7
  %v96 = vsub.s32 0, %v95
  %v97 = vrot.slane %v92, %v96
  %v98 = vlaneseq
  %v99 = vshrl.u32 %v98, 7
  %v100 = vsub.s32 1, %v99
  %v101 = vrot.slane %v92, %v100
  %v104 = vmul.f32 %v90, %v97
  %v105 = vmul.f32 %v87, %v101
  %106 = vst [vmem:[#allocation2 + $0x10] sm:$0xf] %v104
  %107 = vst [vmem:[#allocation2 + $0x18] sm:$0xf] %v105
  %108 = vrot.lane.b32.xlu0 %v21, 1
  %v109 = vpop.permute.xlu0 %108
  %111 = vrot.lane.b32.xlu0 %v19, 1
  %v112 = vpop.permute.xlu0 %111
  %vm113 = vcmask 7168
  %v114 = vsel %vm113, %v112, %v109
  %v117 = vsel %vm113, %v109, %v112
  %s118 = scalar_lea.vmem %s3, 3
  %v119 = vld [vmem:[%s118] ss:$8 sm:$0x3]
  %v121 = vlaneseq
  %v122 = vshrl.u32 %v121, 7
  %v123 = vsub.s32 0, %v122
  %v124 = vrot.slane %v119, %v123
  %v125 = vlaneseq
  %v126 = vshrl.u32 %v125, 7
  %v127 = vsub.s32 1, %v126
  %v128 = vrot.slane %v119, %v127
  %v131 = vmul.f32 %v117, %v124
  %v132 = vmul.f32 %v114, %v128
  %v135 = vrot.slane %v131, 4
  %v136 = vrot.slane %v132, 4
  %139 = vst [vmem:[#allocation2 + $0x10] sm:$0xf0] %v135
  %140 = vst [vmem:[#allocation2 + $0x18] sm:$0xf0] %v136
  %142 = vst [vmem:[#allocation2 + $0x20] sm:$0xf] %v19
  %143 = vst [vmem:[#allocation2 + $0x28] sm:$0xf] %v21
  %144 = vrot.lane.b32.xlu0 %v19, 127
  %v145 = vpop.permute.xlu0 %144
  %146 = vrot.lane.b32.xlu0 %v21, 127
  %v147 = vpop.permute.xlu0 %146
  %vm148 = vcmask 1039360
  %v149 = vsel %vm148, %v145, %v147
  %v153 = vsel %vm148, %v147, %v145
  %s154 = scalar_lea.vmem %s3, 5
  %v155 = vld [vmem:[%s154] ss:$8 sm:$0x3]
  %v157 = vlaneseq
  %v158 = vshrl.u32 %v157, 7
  %v159 = vsub.s32 0, %v158
  %v160 = vrot.slane %v155, %v159
  %v161 = vlaneseq
  %v162 = vshrl.u32 %v161, 7
  %v163 = vsub.s32 1, %v162
  %v164 = vrot.slane %v155, %v163
  %v167 = vmul.f32 %v149, %v160
  %v168 = vmul.f32 %v153, %v164
  %v171 = vrot.slane %v167, 4
  %v172 = vrot.slane %v168, 4
  %175 = vst [vmem:[#allocation2 + $0x20] sm:$0xf0] %v171
  %176 = vst [vmem:[#allocation2 + $0x28] sm:$0xf0] %v172
  %177 = vrot.lane.b32.xlu0 %v19, 113
  %v178 = vpop.permute.xlu0 %177
  %179 = vrot.lane.b32.xlu0 %v21, 113
  %v180 = vpop.permute.xlu0 %179
  %vm181 = vcmask 924672
  %v182 = vsel %vm181, %v178, %v180
  %v186 = vsel %vm181, %v180, %v178
  %s187 = scalar_lea.vmem %s3, 6
  %v188 = vld [vmem:[%s187] ss:$8 sm:$0x3]
  %v190 = vlaneseq
  %v191 = vshrl.u32 %v190, 7
  %v192 = vsub.s32 0, %v191
  %v193 = vrot.slane %v188, %v192
  %v194 = vlaneseq
  %v195 = vshrl.u32 %v194, 7
  %v196 = vsub.s32 1, %v195
  %v197 = vrot.slane %v188, %v196
  %v200 = vmul.f32 %v182, %v193
  %v201 = vmul.f32 %v186, %v197
  %202 = vst [vmem:[#allocation2 + $0x30] sm:$0xf] %v200
  %203 = vst [vmem:[#allocation2 + $0x38] sm:$0xf] %v201
  %204 = vrot.lane.b32.xlu0 %v19, 112
  %v205 = vpop.permute.xlu0 %204
  %206 = vrot.lane.b32.xlu0 %v21, 112
  %v207 = vpop.permute.xlu0 %206
  %vm208 = vcmask 916480
  %v209 = vsel %vm208, %v205, %v207
  %v213 = vsel %vm208, %v207, %v205
  %s214 = scalar_lea.vmem %s3, 7
  %v215 = vld [vmem:[%s214] ss:$8 sm:$0x3]
  %v217 = vlaneseq
  %v218 = vshrl.u32 %v217, 7
  %v219 = vsub.s32 0, %v218
  %v220 = vrot.slane %v215, %v219
  %v221 = vlaneseq
  %v222 = vshrl.u32 %v221, 7
  %v223 = vsub.s32 1, %v222
  %v224 = vrot.slane %v215, %v223
  %v227 = vmul.f32 %v209, %v220
  %v228 = vmul.f32 %v213, %v224
  %v231 = vrot.slane %v227, 4
  %v232 = vrot.slane %v228, 4
  %235 = vst [vmem:[#allocation2 + $0x30] sm:$0xf0] %v231
  %236 = vst [vmem:[#allocation2 + $0x38] sm:$0xf0] %v232
  %237 = vrot.lane.b32.xlu0 %v19, 111
  %v238 = vpop.permute.xlu0 %237
  %239 = vrot.lane.b32.xlu0 %v21, 111
  %v240 = vpop.permute.xlu0 %239
  %vm241 = vcmask 908288
  %v242 = vsel %vm241, %v238, %v240
  %v246 = vsel %vm241, %v240, %v238
  %s247 = scalar_lea.vmem %s3, 16
  %v248 = vld [vmem:[%s247] ss:$8 sm:$0x3]
  %v250 = vlaneseq
  %v251 = vshrl.u32 %v250, 7
  %v252 = vsub.s32 0, %v251
  %v253 = vrot.slane %v248, %v252
  %v254 = vlaneseq
  %v255 = vshrl.u32 %v254, 7
  %v256 = vsub.s32 1, %v255
  %v257 = vrot.slane %v248, %v256
  %v260 = vmul.f32 %v242, %v253
  %v261 = vmul.f32 %v246, %v257
  %262 = vst [vmem:[#allocation2 + $0x40] sm:$0xf] %v260
  %263 = vst [vmem:[#allocation2 + $0x48] sm:$0xf] %v261
  %v264 = vld [vmem:[#allocation2] sm:$0xff]
  %v265 = vld [vmem:[#allocation2 + $0x8] sm:$0xff]
  %v266 = vld [vmem:[#allocation2 + $0x10] sm:$0xff]
  %v267 = vld [vmem:[#allocation2 + $0x18] sm:$0xff]
  %v268 = vld [vmem:[#allocation2 + $0x20] sm:$0xff]
  %v269 = vld [vmem:[#allocation2 + $0x28] sm:$0xff]
  %v270 = vld [vmem:[#allocation2 + $0x30] sm:$0xff]
  %v271 = vld [vmem:[#allocation2 + $0x38] sm:$0xff]
  %v272 = vld [vmem:[#allocation2 + $0x40] sm:$0xf]
  %v273 = vld [vmem:[#allocation2 + $0x48] sm:$0xf]
  %275 = vset.pattern.permute.xlu0 0
  %276 = vperm.xlu0 %275, %v18
  %v277 = vpop.permute.xlu0 %276
  %vm279 = vcmask 293888
  %v281 = vsel %vm279, %v17, 0
  %vm283 = vcmask 1043456
  %v285 = vsel %vm283, %v272, 0
  %v288 = vsel %vm283, %v273, 0
  %290 = vmatprep.subr.mxu0 0.0
  %291 = vmatpush1.msra.mxu0 0.0
  %292 = vmatprep.subr.mxu0 0.0
  %293 = vmatpush1.msra.mxu0 0.0
  %294 = vmatprep.subr.mxu0 0.0
  %295 = vmatpush1.msra.mxu0 0.0
  %296 = vmatprep.subr.mxu0 0.0
  %297 = vmatpush1.msra.mxu0 0.0
  %298 = vmatprep.subr.mxu0 0.0
  %299 = vmatpush1.msra.mxu0 0.0
  %300 = vmatprep.subr.mxu0 0.0
  %301 = vmatpush1.msra.mxu0 0.0
  %302 = vmatprep.subr.mxu0 0.0
  %303 = vmatpush1.msra.mxu0 0.0
  %304 = vmatprep.subr.mxu0 0.0
  %305 = vmatpush1.msra.mxu0 0.0
  %306 = vmatprep.subr.mxu0 0.0
  %307 = vmatpush1.msra.mxu0 0.0
  %308 = vmatprep.subr.mxu0 0.0
  %309 = vmatpush1.msra.mxu0 0.0
  %310 = vmatprep.subr.mxu0 0.0
  %311 = vmatpush1.msra.mxu0 0.0
  %312 = vmatprep.subr.mxu0 %v288
  %313 = vmatpush1.msra.mxu0 %v285
  %314 = vmatprep.subr.mxu0 %v271
  %315 = vmatpush1.msra.mxu0 %v270
  %316 = vmatprep.subr.mxu0 %v269
  %317 = vmatpush1.msra.mxu0 %v268
  %318 = vmatprep.subr.mxu0 %v267
  %319 = vmatpush1.msra.mxu0 %v266
  %320 = vmatprep.subr.mxu0 %v265
  %321 = vmatpush1.msra.mxu0 %v264
  %322 = vmatprep.subr.mxu0 0.0
  %323 = vmatpush2.msra.mxu0 0.0
  %324 = vmatprep.subr.mxu0 0.0
  %325 = vmatpush2.msra.mxu0 0.0
  %326 = vmatprep.subr.mxu0 0.0
  %327 = vmatpush2.msra.mxu0 0.0
  %328 = vmatprep.subr.mxu0 0.0
  %329 = vmatpush2.msra.mxu0 0.0
  %330 = vmatprep.subr.mxu0 0.0
  %331 = vmatpush2.msra.mxu0 0.0
  %332 = vmatprep.subr.mxu0 0.0
  %333 = vmatpush2.msra.mxu0 0.0
  %334 = vmatprep.subr.mxu0 0.0
  %335 = vmatpush2.msra.mxu0 0.0
  %336 = vmatprep.subr.mxu0 0.0
  %337 = vmatpush2.msra.mxu0 0.0
  %338 = vmatprep.subr.mxu0 0.0
  %339 = vmatpush2.msra.mxu0 0.0
  %340 = vmatprep.subr.mxu0 0.0
  %341 = vmatpush2.msra.mxu0 0.0
  %342 = vmatprep.subr.mxu0 0.0
  %343 = vmatpush2.msra.mxu0 0.0
  %344 = vmatprep.subr.mxu0 0.0
  %345 = vmatpush2.msra.mxu0 0.0
  %346 = vmatprep.subr.mxu0 0.0
  %347 = vmatpush2.msra.mxu0 0.0
  %348 = vmatprep.subr.mxu0 0.0
  %349 = vmatpush2.msra.mxu0 0.0
  %350 = vmatprep.subr.mxu0 0.0
  %351 = vmatpush2.msra.mxu0 0.0
  %352 = vmatprep.subr.mxu0 0.0
  %353 = vmatpush2.msra.mxu0 0.0
  %354 = vmatprep.mubr.f32.mxu0 0.0
  %355 = vmatmul.mubr.f32.gmra.mxu0 %v281
  %v356 = vpop.f32.mrf.mxu0
  %v357 = vadd.f32 %v277, %v356
  %v358 = vpop.f32.mrf.mxu0
  %v359 = vadd.f32 %v277, %v358
  %360 = vdwg.mxu0
  %361 = vst [vmem:[%s4] sm:$0xf] %v357
  %362 = vst [vmem:[%s4 + $0x8] sm:$0xf] %v359
  %v363 = vand.u32 2147483647, %v357
  %v364 = vand.u32 2147483647, %v359
  %365 = vst [vmem:[%s4] sm:$0xf0] %v363
  %366 = vst [vmem:[%s4 + $0x8] sm:$0xf0] %v364
  %s367 = scalar_lea.vmem %s0, 8
  %v368 = vld [vmem:[%s367] sm:$0xff]
  %v370 = vcombine.high %v368, %v368
  %371 = vrot.lane.b32.xlu0 %v370, 17
  %v372 = vpop.permute.xlu0 %371
  %374 = vrot.lane.b32.xlu0 %v368, 17
  %v375 = vpop.permute.xlu0 %374
  %v376 = vsel %vm27, %v375, %v372
  %v379 = vsel %vm27, %v372, %v375
  %v380 = vld [vmem:[%s3] ss:$8 sm:$0x3]
  %v382 = vlaneseq
  %v383 = vshrl.u32 %v382, 7
  %v384 = vsub.s32 0, %v383
  %v385 = vrot.slane %v380, %v384
  %v386 = vlaneseq
  %v387 = vshrl.u32 %v386, 7
  %v388 = vsub.s32 1, %v387
  %v389 = vrot.slane %v380, %v388
  %v392 = vmul.f32 %v379, %v385
  %v393 = vmul.f32 %v376, %v389
  %394 = vst [vmem:[#allocation2] sm:$0xf] %v392
  %395 = vst [vmem:[#allocation2 + $0x8] sm:$0xf] %v393
  %396 = vrot.lane.b32.xlu0 %v370, 16
  %v397 = vpop.permute.xlu0 %396
  %399 = vrot.lane.b32.xlu0 %v368, 16
  %v400 = vpop.permute.xlu0 %399
  %v401 = vsel %vm53, %v400, %v397
  %v404 = vsel %vm53, %v397, %v400
  %v405 = vld [vmem:[%s58] ss:$8 sm:$0x3]
  %v407 = vlaneseq
  %v408 = vshrl.u32 %v407, 7
  %v409 = vsub.s32 0, %v408
  %v410 = vrot.slane %v405, %v409
  %v411 = vlaneseq
  %v412 = vshrl.u32 %v411, 7
  %v413 = vsub.s32 1, %v412
  %v414 = vrot.slane %v405, %v413
  %v417 = vmul.f32 %v404, %v410
  %v418 = vmul.f32 %v401, %v414
  %v421 = vrot.slane %v417, 4
  %v422 = vrot.slane %v418, 4
  %425 = vst [vmem:[#allocation2] sm:$0xf0] %v421
  %426 = vst [vmem:[#allocation2 + $0x8] sm:$0xf0] %v422
  %427 = vrot.lane.b32.xlu0 %v370, 15
  %v428 = vpop.permute.xlu0 %427
  %430 = vrot.lane.b32.xlu0 %v368, 15
  %v431 = vpop.permute.xlu0 %430
  %v432 = vsel %vm86, %v431, %v428
  %v435 = vsel %vm86, %v428, %v431
  %v436 = vld [vmem:[%s91] ss:$8 sm:$0x3]
  %v438 = vlaneseq
  %v439 = vshrl.u32 %v438, 7
  %v440 = vsub.s32 0, %v439
  %v441 = vrot.slane %v436, %v440
  %v442 = vlaneseq
  %v443 = vshrl.u32 %v442, 7
  %v444 = vsub.s32 1, %v443
  %v445 = vrot.slane %v436, %v444
  %v448 = vmul.f32 %v435, %v441
  %v449 = vmul.f32 %v432, %v445
  %450 = vst [vmem:[#allocation2 + $0x10] sm:$0xf] %v448
  %451 = vst [vmem:[#allocation2 + $0x18] sm:$0xf] %v449
  %452 = vrot.lane.b32.xlu0 %v370, 1
  %v453 = vpop.permute.xlu0 %452
  %455 = vrot.lane.b32.xlu0 %v368, 1
  %v456 = vpop.permute.xlu0 %455
  %v457 = vsel %vm113, %v456, %v453
  %v460 = vsel %vm113, %v453, %v456
  %v461 = vld [vmem:[%s118] ss:$8 sm:$0x3]
  %v463 = vlaneseq
  %v464 = vshrl.u32 %v463, 7
  %v465 = vsub.s32 0, %v464
  %v466 = vrot.slane %v461, %v465
  %v467 = vlaneseq
  %v468 = vshrl.u32 %v467, 7
  %v469 = vsub.s32 1, %v468
  %v470 = vrot.slane %v461, %v469
  %v473 = vmul.f32 %v460, %v466
  %v474 = vmul.f32 %v457, %v470
  %v477 = vrot.slane %v473, 4
  %v478 = vrot.slane %v474, 4
  %481 = vst [vmem:[#allocation2 + $0x10] sm:$0xf0] %v477
  %482 = vst [vmem:[#allocation2 + $0x18] sm:$0xf0] %v478
  %484 = vst [vmem:[#allocation2 + $0x20] sm:$0xf] %v368
  %485 = vst [vmem:[#allocation2 + $0x28] sm:$0xf] %v370
  %486 = vrot.lane.b32.xlu0 %v368, 127
  %v487 = vpop.permute.xlu0 %486
  %488 = vrot.lane.b32.xlu0 %v370, 127
  %v489 = vpop.permute.xlu0 %488
  %v490 = vsel %vm148, %v487, %v489
  %v494 = vsel %vm148, %v489, %v487
  %v495 = vld [vmem:[%s154] ss:$8 sm:$0x3]
  %v497 = vlaneseq
  %v498 = vshrl.u32 %v497, 7
  %v499 = vsub.s32 0, %v498
  %v500 = vrot.slane %v495, %v499
  %v501 = vlaneseq
  %v502 = vshrl.u32 %v501, 7
  %v503 = vsub.s32 1, %v502
  %v504 = vrot.slane %v495, %v503
  %v507 = vmul.f32 %v490, %v500
  %v508 = vmul.f32 %v494, %v504
  %v511 = vrot.slane %v507, 4
  %v512 = vrot.slane %v508, 4
  %515 = vst [vmem:[#allocation2 + $0x20] sm:$0xf0] %v511
  %516 = vst [vmem:[#allocation2 + $0x28] sm:$0xf0] %v512
  %517 = vrot.lane.b32.xlu0 %v368, 113
  %v518 = vpop.permute.xlu0 %517
  %519 = vrot.lane.b32.xlu0 %v370, 113
  %v520 = vpop.permute.xlu0 %519
  %v521 = vsel %vm181, %v518, %v520
  %v525 = vsel %vm181, %v520, %v518
  %v526 = vld [vmem:[%s187] ss:$8 sm:$0x3]
  %v528 = vlaneseq
  %v529 = vshrl.u32 %v528, 7
  %v530 = vsub.s32 0, %v529
  %v531 = vrot.slane %v526, %v530
  %v532 = vlaneseq
  %v533 = vshrl.u32 %v532, 7
  %v534 = vsub.s32 1, %v533
  %v535 = vrot.slane %v526, %v534
  %v538 = vmul.f32 %v521, %v531
  %v539 = vmul.f32 %v525, %v535
  %540 = vst [vmem:[#allocation2 + $0x30] sm:$0xf] %v538
  %541 = vst [vmem:[#allocation2 + $0x38] sm:$0xf] %v539
  %542 = vrot.lane.b32.xlu0 %v368, 112
  %v543 = vpop.permute.xlu0 %542
  %544 = vrot.lane.b32.xlu0 %v370, 112
  %v545 = vpop.permute.xlu0 %544
  %v546 = vsel %vm208, %v543, %v545
  %v550 = vsel %vm208, %v545, %v543
  %v551 = vld [vmem:[%s214] ss:$8 sm:$0x3]
  %v553 = vlaneseq
  %v554 = vshrl.u32 %v553, 7
  %v555 = vsub.s32 0, %v554
  %v556 = vrot.slane %v551, %v555
  %v557 = vlaneseq
  %v558 = vshrl.u32 %v557, 7
  %v559 = vsub.s32 1, %v558
  %v560 = vrot.slane %v551, %v559
  %v563 = vmul.f32 %v546, %v556
  %v564 = vmul.f32 %v550, %v560
  %v567 = vrot.slane %v563, 4
  %v568 = vrot.slane %v564, 4
  %571 = vst [vmem:[#allocation2 + $0x30] sm:$0xf0] %v567
  %572 = vst [vmem:[#allocation2 + $0x38] sm:$0xf0] %v568
  %573 = vrot.lane.b32.xlu0 %v368, 111
  %v574 = vpop.permute.xlu0 %573
  %575 = vrot.lane.b32.xlu0 %v370, 111
  %v576 = vpop.permute.xlu0 %575
  %v577 = vsel %vm241, %v574, %v576
  %v581 = vsel %vm241, %v576, %v574
  %v582 = vld [vmem:[%s247] ss:$8 sm:$0x3]
  %v584 = vlaneseq
  %v585 = vshrl.u32 %v584, 7
  %v586 = vsub.s32 0, %v585
  %v587 = vrot.slane %v582, %v586
  %v588 = vlaneseq
  %v589 = vshrl.u32 %v588, 7
  %v590 = vsub.s32 1, %v589
  %v591 = vrot.slane %v582, %v590
  %v594 = vmul.f32 %v577, %v587
  %v595 = vmul.f32 %v581, %v591
  %596 = vst [vmem:[#allocation2 + $0x40] sm:$0xf] %v594
  %597 = vst [vmem:[#allocation2 + $0x48] sm:$0xf] %v595
  %v598 = vld [vmem:[#allocation2] sm:$0xff]
  %v599 = vld [vmem:[#allocation2 + $0x8] sm:$0xff]
  %v600 = vld [vmem:[#allocation2 + $0x10] sm:$0xff]
  %v601 = vld [vmem:[#allocation2 + $0x18] sm:$0xff]
  %v602 = vld [vmem:[#allocation2 + $0x20] sm:$0xff]
  %v603 = vld [vmem:[#allocation2 + $0x28] sm:$0xff]
  %v604 = vld [vmem:[#allocation2 + $0x30] sm:$0xff]
  %v605 = vld [vmem:[#allocation2 + $0x38] sm:$0xff]
  %v606 = vld [vmem:[#allocation2 + $0x40] sm:$0xf]
  %v607 = vld [vmem:[#allocation2 + $0x48] sm:$0xf]
  %v609 = vsel %vm283, %v606, 0
  %v612 = vsel %vm283, %v607, 0
  %614 = vmatprep.subr.mxu0 0.0
  %615 = vmatpush1.msra.mxu0 0.0
  %616 = vmatprep.subr.mxu0 0.0
  %617 = vmatpush1.msra.mxu0 0.0
  %618 = vmatprep.subr.mxu0 0.0
  %619 = vmatpush1.msra.mxu0 0.0
  %620 = vmatprep.subr.mxu0 0.0
  %621 = vmatpush1.msra.mxu0 0.0
  %622 = vmatprep.subr.mxu0 0.0
  %623 = vmatpush1.msra.mxu0 0.0
  %624 = vmatprep.subr.mxu0 0.0
  %625 = vmatpush1.msra.mxu0 0.0
  %626 = vmatprep.subr.mxu0 0.0
  %627 = vmatpush1.msra.mxu0 0.0
  %628 = vmatprep.subr.mxu0 0.0
  %629 = vmatpush1.msra.mxu0 0.0
  %630 = vmatprep.subr.mxu0 0.0
  %631 = vmatpush1.msra.mxu0 0.0
  %632 = vmatprep.subr.mxu0 0.0
  %633 = vmatpush1.msra.mxu0 0.0
  %634 = vmatprep.subr.mxu0 0.0
  %635 = vmatpush1.msra.mxu0 0.0
  %636 = vmatprep.subr.mxu0 %v612
  %637 = vmatpush1.msra.mxu0 %v609
  %638 = vmatprep.subr.mxu0 %v605
  %639 = vmatpush1.msra.mxu0 %v604
  %640 = vmatprep.subr.mxu0 %v603
  %641 = vmatpush1.msra.mxu0 %v602
  %642 = vmatprep.subr.mxu0 %v601
  %643 = vmatpush1.msra.mxu0 %v600
  %644 = vmatprep.subr.mxu0 %v599
  %645 = vmatpush1.msra.mxu0 %v598
  %646 = vmatprep.subr.mxu0 0.0
  %647 = vmatpush2.msra.mxu0 0.0
  %648 = vmatprep.subr.mxu0 0.0
  %649 = vmatpush2.msra.mxu0 0.0
  %650 = vmatprep.subr.mxu0 0.0
  %651 = vmatpush2.msra.mxu0 0.0
  %652 = vmatprep.subr.mxu0 0.0
  %653 = vmatpush2.msra.mxu0 0.0
  %654 = vmatprep.subr.mxu0 0.0
  %655 = vmatpush2.msra.mxu0 0.0
  %656 = vmatprep.subr.mxu0 0.0
  %657 = vmatpush2.msra.mxu0 0.0
  %658 = vmatprep.subr.mxu0 0.0
  %659 = vmatpush2.msra.mxu0 0.0
  %660 = vmatprep.subr.mxu0 0.0
  %661 = vmatpush2.msra.mxu0 0.0
  %662 = vmatprep.subr.mxu0 0.0
  %663 = vmatpush2.msra.mxu0 0.0
  %664 = vmatprep.subr.mxu0 0.0
  %665 = vmatpush2.msra.mxu0 0.0
  %666 = vmatprep.subr.mxu0 0.0
  %667 = vmatpush2.msra.mxu0 0.0
  %668 = vmatprep.subr.mxu0 0.0
  %669 = vmatpush2.msra.mxu0 0.0
  %670 = vmatprep.subr.mxu0 0.0
  %671 = vmatpush2.msra.mxu0 0.0
  %672 = vmatprep.subr.mxu0 0.0
  %673 = vmatpush2.msra.mxu0 0.0
  %674 = vmatprep.subr.mxu0 0.0
  %675 = vmatpush2.msra.mxu0 0.0
  %676 = vmatprep.subr.mxu0 0.0
  %677 = vmatpush2.msra.mxu0 0.0
  %678 = vmatprep.mubr.f32.mxu0 0.0
  %679 = vmatmul.mubr.f32.gmra.mxu0 %v281
  %v680 = vpop.f32.mrf.mxu0
  %v681 = vadd.f32 %v277, %v680
  %v682 = vpop.f32.mrf.mxu0
  %v683 = vadd.f32 %v277, %v682
  %684 = vdwg.mxu0
  %s685 = scalar_lea.vmem %s4, 16
  %686 = vst [vmem:[%s685] sm:$0xf] %v681
  %687 = vst [vmem:[%s685 + $0x8] sm:$0xf] %v683
  %v688 = vand.u32 2147483647, %v681
  %v689 = vand.u32 2147483647, %v683
  %690 = vst [vmem:[%s685] sm:$0xf0] %v688
  %691 = vst [vmem:[%s685 + $0x8] sm:$0xf0] %v689
  // Predicated region
  $region18: #{residual_magnitude_l1_forward.1} parent=0 // pred_check
    _
  $region19: #{residual_magnitude_l1_forward.1} parent=0 // pred_check_branch
    %693 = sbr.rel (0) target = $region21
  $region20: #{residual_magnitude_l1_forward.1} parent=0 // pred_region
    _
  $region21: #{residual_magnitude_l1_forward.1} parent=0 // pred_fallthru
    _
  // Predicated region
  $region22: #{residual_magnitude_l1_forward.1} parent=0 // pred_check
    _
  $region23: #{residual_magnitude_l1_forward.1} parent=0 // pred_check_branch
    %695 = sbr.rel (0) target = $region25
  $region24: #{residual_magnitude_l1_forward.1} parent=0 // pred_region
    _
  $region25: #{residual_magnitude_l1_forward.1} parent=0 // pred_fallthru
    _

</llo_original>
